<compile_context>
chip_gen: v7x
topology: tpu7x:2x2x1
jax: 0.10.0
libtpu: 0.0.40
codegen_flags: <defaults>
</compile_context>

<pallas_src>
import jax
import jax.numpy as jnp
from jax.experimental import pallas as pl
from jax.experimental.pallas import tpu as pltpu


def _add_conv1x1_kernel(a_ref, b_ref, w_ref, o_ref):
    # a_ref, b_ref: (Cin, TP)   w_ref: (Cout, Cin)   o_ref: (Cout, TP)
    x = a_ref[...] + b_ref[...]                       # fused elementwise add (VPU)
    o_ref[...] = jnp.dot(
        w_ref[...], x, preferred_element_type=jnp.float32
    ).astype(o_ref.dtype)                             # MXU matmul, lane-dense store


def _round_down_128(x):
    return (x // 128) * 128


def _round_up_128(x):
    return ((x + 127) // 128) * 128


def _vmem_capacity_bytes():
    """Physical VMEM of the current TPU generation; conservative fallback."""
    try:
        return int(pltpu.get_tpu_info().vmem_capacity_bytes)
    except Exception:
        return 64 * 1024 * 1024   # v7x per-TensorCore size; safe lower bound


def _vmem_limit_bytes():
    # Raise the scoped-VMEM limit above the default, but leave headroom for
    # the compiler's internal scratch (and stay well under physical capacity).
    cap = _vmem_capacity_bytes()
    return int(min(cap * 3 // 4, 64 * 1024 * 1024))


def _pick_pixel_tile(P, N, cin, cout, itemsize, vmem_limit, *, hard_cap=16384):
    """Largest 128-multiple pixel tile whose double-buffered working set fits
    the scoped-VMEM budget, capped, and split so the grid has >= 2 steps
    (megacore on v7x)."""
    if P <= 128:
        return P                                   # single full-width block
    bytes_per_pixel = (2 * cin + cout) * itemsize  # two input blocks + output block
    budget = max(vmem_limit - 4 * 1024 * 1024, 2 * 1024 * 1024)
    tp_max = budget // (2 * bytes_per_pixel)       # x2 for double-buffering
    tp = min(int(tp_max), hard_cap, _round_up_128(P))
    tp = max(128, _round_down_128(tp))
    # v7x has 2 TensorCores: make sure the ("parallel","parallel") grid has at
    # least 2 steps so neither core sits idle.
    while N * pl.cdiv(P, tp) < 2 and tp > 128:
        tp = max(128, _round_down_128(pl.cdiv(tp, 2)))
    return tp


def add_conv1x1(x40_nchw, x28_nchw, weight_oihw):
    """x40, x28: [N, Cin, H, W] ; weight: [Cout, Cin, 1, 1] ; returns [N, Cout, H, W]."""
    N, Cin, H, W = x40_nchw.shape
    Cout = weight_oihw.shape[0]
    P = H * W

    itemsize = jnp.dtype(x40_nchw.dtype).itemsize
    vmem_limit = _vmem_limit_bytes()
    tp = _pick_pixel_tile(P, N, Cin, Cout, itemsize, vmem_limit)

    # Free reshapes (contiguous) — no transposes, no extra HBM traffic.
    a = x40_nchw.reshape(N, Cin, P)
    b = x28_nchw.reshape(N, Cin, P)
    w = weight_oihw[:, :, 0, 0]          # (Cout, Cin)

    # Ragged grid: Pallas masks the tail block's store; OOB pixel columns are
    # harmless because the contraction is only over Cin.
    grid = (N, pl.cdiv(P, tp))

    cost = pl.CostEstimate(
        flops=2 * N * P * Cin * Cout,
        transcendentals=0,
        bytes_accessed=(2 * Cin + Cout) * itemsize * N * P
        + Cout * Cin * jnp.dtype(w.dtype).itemsize,
    )

    out_flat = pl.pallas_call(
        _add_conv1x1_kernel,
        out_shape=jax.ShapeDtypeStruct((N, Cout, P), x40_nchw.dtype),
        grid_spec=pltpu.PrefetchScalarGridSpec(
            num_scalar_prefetch=0,
            grid=grid,
            in_specs=[
                # Leading batch dim squeezed out of the kernel refs.
                pl.BlockSpec((None, Cin, tp), lambda n, p: (n, 0, p)),
                pl.BlockSpec((None, Cin, tp), lambda n, p: (n, 0, p)),
                # Weight stays resident in VMEM across the whole grid.
                pl.BlockSpec((Cout, Cin), lambda n, p: (0, 0)),
            ],
            out_specs=pl.BlockSpec((None, Cout, tp), lambda n, p: (n, 0, p)),
        ),
        compiler_params=pltpu.CompilerParams(
            dimension_semantics=("parallel", "parallel"),
            vmem_limit_bytes=vmem_limit,
        ),
        cost_estimate=cost,
    )(a, b, w)

    return out_flat.reshape(N, Cout, H, W)


if __name__ == "__main__":
    key = jax.random.PRNGKey(0)
    k1, k2, k3 = jax.random.split(key, 3)

    # Small shapes consistent with the module: Cin=24 / Cout=144 fixed by the
    # conv; batch=2, spatial=16 (H*W = 256; grid has >= 2 steps so the batch
    # axis still shards across v7x's two TensorCores).
    N, Cin, H, W = 2, 24, 16, 16
    Cout = 144

    x40 = jax.random.normal(k1, (N, Cin, H, W), dtype=jnp.float32)
    x28 = jax.random.normal(k2, (N, Cin, H, W), dtype=jnp.float32)
    # Deterministic synthetic weight for Conv2d(24, 144, 1, 1, bias=False).
    weight = jax.random.normal(k3, (Cout, Cin, 1, 1), dtype=jnp.float32) * 0.05

    out = add_conv1x1(x40, x28, weight)
    out = jax.block_until_ready(out)

    # Pure-JAX reference check of the fused add + 1x1 conv.
    ref = jnp.einsum("nchw,oc->nohw", x40 + x28, weight[:, :, 0, 0])
    assert out.shape == (N, Cout, H, W)
    assert jnp.allclose(out, ref, atol=1e-4, rtol=1e-4)

    print("KERNEL_OK")
</pallas_src>

<mosaic_0001>
module attributes {stable_mosaic.version = 11 : i64} {
  func.func @_add_conv1x1_kernel(%arg0: i32, %arg1: i32, %arg2: memref<1x24x256xf32, #tpu.memory_space<vmem>>, %arg3: memref<1x24x256xf32, #tpu.memory_space<vmem>>, %arg4: memref<144x24xf32, #tpu.memory_space<vmem>>, %arg5: memref<1x144x256xf32, #tpu.memory_space<vmem>>) attributes {dimension_semantics = [#tpu.dimension_semantics<parallel>, #tpu.dimension_semantics<parallel>], iteration_bounds = array<i64: 2, 1>, scalar_prefetch = 0 : i64, scratch_operands = 0 : i64, tpu.core_type = #tpu.core_type<tc>, window_params = [{transform_indices = @transform_0, window_bounds = array<i64: 1, 24, 256>}, {transform_indices = @transform_1, window_bounds = array<i64: 1, 24, 256>}, {pipeline_mode = #tpu.pipeline_mode<synchronous>, transform_indices = @transform_2, window_bounds = array<i64: 144, 24>}, {transform_indices = @transform_3, window_bounds = array<i64: 1, 144, 256>}]} {
    %c0 = arith.constant 0 : index
    %c0_0 = arith.constant 0 : index
    %c0_1 = arith.constant 0 : index
    %0 = vector.load %arg2[%c0, %c0_0, %c0_1] : memref<1x24x256xf32, #tpu.memory_space<vmem>>, vector<1x24x256xf32>
    %1 = vector.shape_cast %0 : vector<1x24x256xf32> to vector<24x256xf32>
    %c0_2 = arith.constant 0 : index
    %c0_3 = arith.constant 0 : index
    %c0_4 = arith.constant 0 : index
    %2 = vector.load %arg3[%c0_2, %c0_3, %c0_4] : memref<1x24x256xf32, #tpu.memory_space<vmem>>, vector<1x24x256xf32>
    %3 = vector.shape_cast %2 : vector<1x24x256xf32> to vector<24x256xf32>
    %4 = arith.addf %1, %3 : vector<24x256xf32>
    %c0_5 = arith.constant 0 : index
    %c0_6 = arith.constant 0 : index
    %5 = vector.load %arg4[%c0_5, %c0_6] : memref<144x24xf32, #tpu.memory_space<vmem>>, vector<144x24xf32>
    %cst = arith.constant dense<0.000000e+00> : vector<144x256xf32>
    %6 = tpu.matmul %5, %4, %cst {dimension_numbers = #tpu.dot_dimension_numbers<[1], [0], [0], [1], [0, 0, 1, 1], [], []>} : vector<144x24xf32>, vector<24x256xf32>, vector<144x256xf32> -> vector<144x256xf32>
    %c0_7 = arith.constant 0 : index
    %c0_8 = arith.constant 0 : index
    %c0_9 = arith.constant 0 : index
    %7 = vector.load %arg5[%c0_7, %c0_8, %c0_9] : memref<1x144x256xf32, #tpu.memory_space<vmem>>, vector<1x144x256xf32>
    %8 = vector.shape_cast %7 : vector<1x144x256xf32> to vector<144x256xf32>
    %9 = vector.shape_cast %6 : vector<144x256xf32> to vector<1x144x256xf32>
    tpu.vector_store %arg5[%c0_7, %c0_8, %c0_9], %9 {strides = array<i32>} : memref<1x144x256xf32, #tpu.memory_space<vmem>>, vector<1x144x256xf32>,
    return
  }
  func.func @transform_0(%arg0: i32, %arg1: i32) -> (i32, i32, i32) {
    %c0_i32 = arith.constant 0 : i32
    %c0_i32_0 = arith.constant 0 : i32
    return %arg0, %c0_i32, %arg1 : i32, i32, i32
  }
  func.func @transform_1(%arg0: i32, %arg1: i32) -> (i32, i32, i32) {
    %c0_i32 = arith.constant 0 : i32
    %c0_i32_0 = arith.constant 0 : i32
    return %arg0, %c0_i32, %arg1 : i32, i32, i32
  }
  func.func @transform_2(%arg0: i32, %arg1: i32) -> (i32, i32) {
    %c0_i32 = arith.constant 0 : i32
    %c0_i32_0 = arith.constant 0 : i32
    %c0_i32_1 = arith.constant 0 : i32
    return %c0_i32, %c0_i32_0 : i32, i32
  }
  func.func @transform_3(%arg0: i32, %arg1: i32) -> (i32, i32, i32) {
    %c0_i32 = arith.constant 0 : i32
    %c0_i32_0 = arith.constant 0 : i32
    return %arg0, %c0_i32, %arg1 : i32, i32, i32
  }
}

</mosaic_0001>

<llo_original>
// kernel: tpu_custom_call.1
$region0: #{tpu_custom_call.1}
  #allocation0 [shape = 'u32[]', space=smem, size = 0x4, offset = 0x4, fixed_abs, tag = 'smem constant byte address 0x4 - core index']
  #allocation1 [shape = 'u32[144,128]{1,0:T(1,128)}', space=vmem, size = 0x12000, scoped, tag = 'internal scratch']
  %s0 = inlined_call_operand.vmem [shape: f32[2,24,256], index: 0, kind: input, shape index: {}]
  %s1 = inlined_call_operand.vmem [shape: f32[2,24,256], index: 1, kind: input, shape index: {}]
  %s2 = inlined_call_operand.vmem [shape: f32[144,24], index: 2, kind: input, shape index: {}]
  %s3 = inlined_call_operand.hbm [shape: f32[2,144,256], index: 3, kind: output, shape index: {}]
  %s4 = sld [smem:[#allocation0]]
  $region45: #{tpu_custom_call.1} parent=0
    _
  %s6 = ssub.s32 1, %s4
  %s7 = scalar_select 0, %s6, %s4
  $region1: #{tpu_custom_call.1} parent=0
    #allocation2 [shape = 'u8[294912]{0}', space=vmem, size = 0x48000, scoped, tag = 'output window, operand 0']
    #allocation3 [shape = 's32[2]{0}', space=sflag, size = 0x8, scoped, tag = 'scoped memory for tpu_custom_call.1']
    %8 = vsyncpa [#allocation3], 0
    %s9 = scalar_lea.sflag [#allocation3], 1
    %10 = vsyncpa %s9, 0
    loop: start=0, step=1, limit=4
    $region2: #{tpu_custom_call.1} parent=1 // loop_pre_header
      _
    $region3: #{tpu_custom_call.1} parent=1 // loop_header
      %s12 = sphi 0, %s16
      %p13 = scmp.ge.s32.totalorder %s12, 4
      %s19 = sphi 0, %s31
      %s20 = sphi 0, %s27
      %s21 = sphi 0, %s19
      %s22 = sphi 0, %s20
      %s23 = sphi 0, %s21
      %s24 = sphi 0, %s22
      %s36 = sphi 0, %s38
      %s39 = sphi 0, %s36
      %s40 = sphi 0, %s39
      %s56 = sphi 0, %s40
      %s64 = sphi 0, %s66
      %s67 = sphi 0, %s64
      %s68 = sphi 0, %s67
      %s84 = sphi 0, %s68
      %s88 = sphi 0, %s88
      %s90 = sphi 0, %s88
      %s91 = sphi 0, %s90
      %s105 = sphi 0, %s91
      %s113 = sphi 0, %s115
      %s116 = sphi 0, %s113
      %s117 = sphi 0, %s116
      %s133 = sphi 0, %s117
    $region4: #{tpu_custom_call.1} parent=1 // loop_header_branch
      %15 = sbr.rel (%p13) target = $region8
    $region5: #{tpu_custom_call.1} parent=1 // loop_body
      %s17 = ssub.s32 %s12, 1
      %s18 = ssub.s32 %s12, 2
      %s25 = sadd.s32 1, %s20
      %p26 = scmp.ge.s32.totalorder %s25, 1
      %s27 = scalar_select %p26, 0, %s25
      %s28 = sadd.s32 1, %s19
      %s29 = scalar_select %p26, %s28, %s19
      %p30 = scmp.ge.s32.totalorder %s29, 2
      %s31 = scalar_select %p30, 0, %s29
      %s32 = ssub.s32 %s19, %s31
      %s33 = ssub.s32 %s20, %s27
      %s34 = sor.u32 %s32, %s33
      %p35 = scmp.eq.s32.totalorder %s34, 0
      %s37 = sadd.s32 %s36, 1
      %s38 = scalar_select %p35, %s36, %s37
      %p41 = pneg %p35
      %p42 = scmp.eq.s32.totalorder %s12, 1
      %p43 = por %p41, %p42
      %p44 = scmp.ne.s32.totalorder %s36, %s39
      %p45 = scmp.eq.s32.totalorder %s12, 0
      %p46 = por %p44, %p45
      %p47 = scmp.ne.s32.totalorder %s36, %s39
      %p48 = scmp.eq.s32.totalorder %s17, 1
      %p49 = por %p47, %p48
      %p50 = scmp.ne.s32.totalorder %s39, %s40
      %p51 = scmp.eq.s32.totalorder %s17, 0
      %p52 = por %p50, %p51
      %p53 = scmp.ne.s32.totalorder %s39, %s40
      %p54 = scmp.eq.s32.totalorder %s18, 1
      %p55 = por %p53, %p54
      %p57 = scmp.ne.s32.totalorder %s40, %s56
      %p58 = scmp.eq.s32.totalorder %s18, 0
      %p59 = por %p57, %p58
      %s60 = ssub.s32 %s19, %s31
      %s61 = ssub.s32 %s20, %s27
      %s62 = sor.u32 %s60, %s61
      %p63 = scmp.eq.s32.totalorder %s62, 0
      %s65 = sadd.s32 %s64, 1
      %s66 = scalar_select %p63, %s64, %s65
      %p69 = pneg %p63
      %p70 = scmp.eq.s32.totalorder %s12, 1
      %p71 = por %p69, %p70
      %p72 = scmp.ne.s32.totalorder %s64, %s67
      %p73 = scmp.eq.s32.totalorder %s12, 0
      %p74 = por %p72, %p73
      %p75 = scmp.ne.s32.totalorder %s64, %s67
      %p76 = scmp.eq.s32.totalorder %s17, 1
      %p77 = por %p75, %p76
      %p78 = scmp.ne.s32.totalorder %s67, %s68
      %p79 = scmp.eq.s32.totalorder %s17, 0
      %p80 = por %p78, %p79
      %p81 = scmp.ne.s32.totalorder %s67, %s68
      %p82 = scmp.eq.s32.totalorder %s18, 1
      %p83 = por %p81, %p82
      %p85 = scmp.ne.s32.totalorder %s68, %s84
      %p86 = scmp.eq.s32.totalorder %s18, 0
      %p87 = por %p85, %p86
      %s89 = sadd.s32 %s88, 1
      %p92 = scmp.eq.s32.totalorder %s12, 1
      %p93 = scmp.ne.s32.totalorder %s88, %s90
      %p94 = scmp.eq.s32.totalorder %s12, 0
      %p95 = por %p93, %p94
      %p96 = scmp.ne.s32.totalorder %s88, %s90
      %p97 = scmp.eq.s32.totalorder %s17, 1
      %p98 = por %p96, %p97
      %p99 = scmp.ne.s32.totalorder %s90, %s91
      %p100 = scmp.eq.s32.totalorder %s17, 0
      %p101 = por %p99, %p100
      %p102 = scmp.ne.s32.totalorder %s90, %s91
      %p103 = scmp.eq.s32.totalorder %s18, 1
      %p104 = por %p102, %p103
      %p106 = scmp.ne.s32.totalorder %s91, %s105
      %p107 = scmp.eq.s32.totalorder %s18, 0
      %p108 = por %p106, %p107
      %s109 = ssub.s32 %s19, %s31
      %s110 = ssub.s32 %s20, %s27
      %s111 = sor.u32 %s109, %s110
      %p112 = scmp.eq.s32.totalorder %s111, 0
      %s114 = sadd.s32 %s113, 1
      %s115 = scalar_select %p112, %s113, %s114
      %p118 = pneg %p112
      %p119 = scmp.eq.s32.totalorder %s12, 1
      %p120 = por %p118, %p119
      %p121 = scmp.ne.s32.totalorder %s113, %s116
      %p122 = scmp.eq.s32.totalorder %s12, 0
      %p123 = por %p121, %p122
      %p124 = scmp.ne.s32.totalorder %s113, %s116
      %p125 = scmp.eq.s32.totalorder %s17, 1
      %p126 = por %p124, %p125
      %p127 = scmp.ne.s32.totalorder %s116, %s117
      %p128 = scmp.eq.s32.totalorder %s17, 0
      %p129 = por %p127, %p128
      %p130 = scmp.ne.s32.totalorder %s116, %s117
      %p131 = scmp.eq.s32.totalorder %s18, 1
      %p132 = por %p130, %p131
      %p134 = scmp.ne.s32.totalorder %s117, %s133
      %p135 = scmp.eq.s32.totalorder %s18, 0
      %p136 = por %p134, %p135
      %p137 = scmp.le.s32.totalorder 1, %s12
      %p138 = scmp.lt.s32.totalorder %s12, 3
      %p139 = pnand %p137, %p138
      %p140 = pneg %p139
      // Predicated region
      $region9: #{tpu_custom_call.1} parent=5 // pred_check
        _
      $region10: #{tpu_custom_call.1} parent=5 // pred_check_branch
        %142 = sbr.rel (%p139) target = $region12
      $region11: #{tpu_custom_call.1} parent=5 // pred_region
        %s143 = ssub.s32 %s12, 1
        // Predicated region
        $region13: #{tpu_custom_call.1} parent=11 // pred_check
          %p144 = pneg %p101
        $region14: #{tpu_custom_call.1} parent=11 // pred_check_branch
          %146 = sbr.rel (%p144) target = $region16
        $region15: #{tpu_custom_call.1} parent=11 // pred_region
          _
        $region16: #{tpu_custom_call.1} parent=11 // pred_fallthru
          _
      $region12: #{tpu_custom_call.1} parent=5 // pred_fallthru
        _
      %p147 = scmp.lt.s32.totalorder %s12, 2
      // Predicated region
      $region17: #{tpu_custom_call.1} parent=5 // pred_check
        %p148 = pneg %p147
      $region18: #{tpu_custom_call.1} parent=5 // pred_check_branch
        %150 = sbr.rel (%p148) target = $region20
      $region19: #{tpu_custom_call.1} parent=5 // pred_region
        // Predicated region
        $region21: #{tpu_custom_call.1} parent=19 // pred_check
          %p151 = pneg %p46
        $region22: #{tpu_custom_call.1} parent=19 // pred_check_branch
          %153 = sbr.rel (%p151) target = $region24
        $region23: #{tpu_custom_call.1} parent=19 // pred_region
          %s154 = smul.u32 2, %s20
          %p155 = scmp.lt.s32.totalorder %s19, 1
          %s156 = scalar_select %p155, %s19, 1
          %p157 = scmp.lt.s32.totalorder %s154, 1
          %s158 = scalar_select %p157, %s154, 1
          %s159 = smul.addr %s156, 6
          %s160 = sadd.s32 %s158, %s159
          %s161 = smul.addr %s160, 8
          %s162 = scalar_lea.vmem %s0, %s161
          %s163 = smul.u32 2, %s20
        $region24: #{tpu_custom_call.1} parent=19 // pred_fallthru
          _
        // Predicated region
        $region25: #{tpu_custom_call.1} parent=19 // pred_check
          %p164 = pneg %p74
        $region26: #{tpu_custom_call.1} parent=19 // pred_check_branch
          %166 = sbr.rel (%p164) target = $region28
        $region27: #{tpu_custom_call.1} parent=19 // pred_region
          %s167 = smul.u32 2, %s20
          %p168 = scmp.lt.s32.totalorder %s19, 1
          %s169 = scalar_select %p168, %s19, 1
          %p170 = scmp.lt.s32.totalorder %s167, 1
          %s171 = scalar_select %p170, %s167, 1
          %s172 = smul.addr %s169, 6
          %s173 = sadd.s32 %s171, %s172
          %s174 = smul.addr %s173, 8
          %s175 = scalar_lea.vmem %s1, %s174
          %s176 = smul.u32 2, %s20
        $region28: #{tpu_custom_call.1} parent=19 // pred_fallthru
          _
      $region20: #{tpu_custom_call.1} parent=5 // pred_fallthru
        _
      %p177 = scmp.le.s32.totalorder 1, %s12
      %p178 = scmp.lt.s32.totalorder %s12, 3
      %p179 = pnand %p177, %p178
      %p180 = pneg %p179
      // Predicated region
      $region29: #{tpu_custom_call.1} parent=5 // pred_check
        _
      $region30: #{tpu_custom_call.1} parent=5 // pred_check_branch
        %182 = sbr.rel (%p179) target = $region32
      $region31: #{tpu_custom_call.1} parent=5 // pred_region
        %s183 = ssub.s32 %s12, 1
        %s184 = smul.u32 2, %s22
        %p185 = scmp.lt.s32.totalorder %s21, 1
        %s186 = scalar_select %p185, %s21, 1
        %p187 = scmp.lt.s32.totalorder %s184, 1
        %s188 = scalar_select %p187, %s184, 1
        %s189 = smul.addr %s186, 6
        %s190 = sadd.s32 %s188, %s189
        %s191 = smul.addr %s190, 8
        %s192 = scalar_lea.vmem %s0, %s191
        %p193 = pneg %p52
        %p194 = pneg %p49
        %s195 = smul.u32 2, %s22
        %p196 = scmp.lt.s32.totalorder %s21, 1
        %s197 = scalar_select %p196, %s21, 1
        %p198 = scmp.lt.s32.totalorder %s195, 1
        %s199 = scalar_select %p198, %s195, 1
        %s200 = smul.addr %s197, 6
        %s201 = sadd.s32 %s199, %s200
        %s202 = smul.addr %s201, 8
        %s203 = scalar_lea.vmem %s1, %s202
        %p204 = pneg %p80
        %p205 = pneg %p77
        %p206 = pneg %p101
        %p207 = pneg %p98
        %p208 = pneg %p129
        %p209 = pneg %p126
        %s210 = sand.u32 %s116, 1
        %s211 = scalar_lea.sflag [#allocation3], %s210
        %s212 = sand.u32 %s116, 1
        %s213 = smul.addr %s212, 288
        %s214 = scalar_lea.vmem [#allocation2], %s213
        %s215 = smul.u32 2, %s22
        %p216 = scmp.lt.s32.totalorder %s21, 1
        %s217 = scalar_select %p216, %s21, 1
        %p218 = scmp.lt.s32.totalorder %s215, 1
        %s219 = scalar_select %p218, %s215, 1
        %s220 = smul.addr %s217, 6
        %s221 = sadd.s32 %s219, %s220
        %s222 = smul.addr %s221, 8
        %s223 = scalar_lea.vmem %s0, %s222
        %s224 = smul.u32 2, %s22
        %s225 = smul.u32 2, %s22
        %p226 = scmp.lt.s32.totalorder %s21, 1
        %s227 = scalar_select %p226, %s21, 1
        %p228 = scmp.lt.s32.totalorder %s225, 1
        %s229 = scalar_select %p228, %s225, 1
        %s230 = smul.addr %s227, 6
        %s231 = sadd.s32 %s229, %s230
        %s232 = smul.addr %s231, 8
        %s233 = scalar_lea.vmem %s1, %s232
        %s234 = smul.u32 2, %s22
        %s235 = smul.u32 2, %s22
        %v236 = vld [vmem:[%s223] sm:$0xff]
        %v237 = vld [vmem:[%s223 + $0x8] sm:$0xff]
        %v238 = vld [vmem:[%s223 + $0x10] sm:$0xff]
        %v239 = vld [vmem:[%s223 + $0x18] sm:$0xff]
        %v240 = vld [vmem:[%s223 + $0x20] sm:$0xff]
        %v241 = vld [vmem:[%s223 + $0x28] sm:$0xff]
        %v242 = vld [vmem:[%s233] sm:$0xff]
        %v243 = vld [vmem:[%s233 + $0x8] sm:$0xff]
        %v244 = vld [vmem:[%s233 + $0x10] sm:$0xff]
        %v245 = vld [vmem:[%s233 + $0x18] sm:$0xff]
        %v246 = vld [vmem:[%s233 + $0x20] sm:$0xff]
        %v247 = vld [vmem:[%s233 + $0x28] sm:$0xff]
        %v248 = vadd.f32 %v236, %v242
        %v249 = vadd.f32 %v237, %v243
        %v250 = vadd.f32 %v238, %v244
        %v251 = vadd.f32 %v239, %v245
        %v252 = vadd.f32 %v240, %v246
        %v253 = vadd.f32 %v241, %v247
        %v254 = vld [vmem:[%s2] sm:$0xff]
        %v255 = vld [vmem:[%s2 + $0x8] sm:$0xff]
        %v256 = vld [vmem:[%s2 + $0x10] sm:$0xff]
        %v257 = vld [vmem:[%s2 + $0x18] sm:$0xff]
        %v258 = vld [vmem:[%s2 + $0x20] sm:$0xff]
        %v259 = vld [vmem:[%s2 + $0x28] sm:$0xff]
        %v260 = vld [vmem:[%s2 + $0x30] sm:$0xff]
        %v261 = vld [vmem:[%s2 + $0x38] sm:$0xff]
        %v262 = vld [vmem:[%s2 + $0x40] sm:$0xff]
        %v263 = vld [vmem:[%s2 + $0x48] sm:$0xff]
        %v264 = vld [vmem:[%s2 + $0x50] sm:$0xff]
        %v265 = vld [vmem:[%s2 + $0x58] sm:$0xff]
        %v266 = vld [vmem:[%s2 + $0x60] sm:$0xff]
        %v267 = vld [vmem:[%s2 + $0x68] sm:$0xff]
        %v268 = vld [vmem:[%s2 + $0x70] sm:$0xff]
        %v269 = vld [vmem:[%s2 + $0x78] sm:$0xff]
        %v270 = vld [vmem:[%s2 + $0x80] sm:$0xff]
        %v271 = vld [vmem:[%s2 + $0x88] sm:$0xff]
        %vm272 = vcmask 195584
        %v274 = vsel %vm272, %v254, 0
        %v277 = vsel %vm272, %v255, 0
        %v280 = vsel %vm272, %v256, 0
        %v283 = vsel %vm272, %v257, 0
        %v286 = vsel %vm272, %v258, 0
        %v289 = vsel %vm272, %v259, 0
        %v292 = vsel %vm272, %v260, 0
        %v295 = vsel %vm272, %v261, 0
        %v298 = vsel %vm272, %v262, 0
        %v301 = vsel %vm272, %v263, 0
        %v304 = vsel %vm272, %v264, 0
        %v307 = vsel %vm272, %v265, 0
        %v310 = vsel %vm272, %v266, 0
        %v313 = vsel %vm272, %v267, 0
        %v316 = vsel %vm272, %v268, 0
        %v319 = vsel %vm272, %v269, 0
        %v322 = vsel %vm272, %v270, 0
        %v325 = vsel %vm272, %v271, 0
        %327 = vmatprep.subr.mxu0 %v249
        %328 = vmatpush1.msra.mxu0 %v248
        %329 = vmatprep.subr.mxu0 %v251
        %330 = vmatpush1.msra.mxu0 %v250
        %331 = vmatprep.subr.mxu0 %v253
        %332 = vmatpush1.msra.mxu0 %v252
        %333 = vmatprep.subr.mxu0 0.0
        %334 = vmatpush1.msra.mxu0 0.0
        %335 = vmatprep.subr.mxu0 0.0
        %336 = vmatpush1.msra.mxu0 0.0
        %337 = vmatprep.subr.mxu0 0.0
        %338 = vmatpush1.msra.mxu0 0.0
        %339 = vmatprep.subr.mxu0 0.0
        %340 = vmatpush1.msra.mxu0 0.0
        %341 = vmatprep.subr.mxu0 0.0
        %342 = vmatpush1.msra.mxu0 0.0
        %343 = vmatprep.subr.mxu0 0.0
        %344 = vmatpush1.msra.mxu0 0.0
        %345 = vmatprep.subr.mxu0 0.0
        %346 = vmatpush1.msra.mxu0 0.0
        %347 = vmatprep.subr.mxu0 0.0
        %348 = vmatpush1.msra.mxu0 0.0
        %349 = vmatprep.subr.mxu0 0.0
        %350 = vmatpush1.msra.mxu0 0.0
        %351 = vmatprep.subr.mxu0 0.0
        %352 = vmatpush1.msra.mxu0 0.0
        %353 = vmatprep.subr.mxu0 0.0
        %354 = vmatpush1.msra.mxu0 0.0
        %355 = vmatprep.subr.mxu0 0.0
        %356 = vmatpush1.msra.mxu0 0.0
        %357 = vmatprep.subr.mxu0 0.0
        %358 = vmatpush1.msra.mxu0 0.0
        %359 = vmatprep.subr.mxu0 0.0
        %360 = vmatpush1.msra.mxu0 0.0
        %361 = vmatprep.subr.mxu0 0.0
        %362 = vmatpush1.msra.mxu0 0.0
        %363 = vmatprep.subr.mxu0 0.0
        %364 = vmatpush1.msra.mxu0 0.0
        %365 = vmatprep.subr.mxu0 0.0
        %366 = vmatpush1.msra.mxu0 0.0
        %367 = vmatprep.subr.mxu0 0.0
        %368 = vmatpush1.msra.mxu0 0.0
        %369 = vmatprep.subr.mxu0 0.0
        %370 = vmatpush1.msra.mxu0 0.0
        %371 = vmatprep.subr.mxu0 0.0
        %372 = vmatpush1.msra.mxu0 0.0
        %373 = vmatprep.subr.mxu0 0.0
        %374 = vmatpush1.msra.mxu0 0.0
        %375 = vmatprep.subr.mxu0 0.0
        %376 = vmatpush1.msra.mxu0 0.0
        %377 = vmatprep.subr.mxu0 0.0
        %378 = vmatpush1.msra.mxu0 0.0
        %379 = vmatprep.subr.mxu0 0.0
        %380 = vmatpush1.msra.mxu0 0.0
        %381 = vmatprep.subr.mxu0 0.0
        %382 = vmatpush1.msra.mxu0 0.0
        %383 = vmatprep.subr.mxu0 0.0
        %384 = vmatpush1.msra.mxu0 0.0
        %385 = vmatprep.subr.mxu0 0.0
        %386 = vmatpush1.msra.mxu0 0.0
        %387 = vmatprep.subr.mxu0 0.0
        %388 = vmatpush1.msra.mxu0 0.0
        %389 = vmatprep.subr.mxu0 0.0
        %390 = vmatpush1.msra.mxu0 0.0
        %391 = vmatprep.mubr.f32.mxu0 0.0
        %392 = vmatmul.mubr.f32.gmra.mrb[0].mxu0 %v274
        %v393 = vpop.f32.mrb[0].mxu0
        %v394 = vadd.f32 0.0, %v393
        %v395 = vpop.f32.mrb[0].mxu0
        %v396 = vadd.f32 0.0, %v395
        %397 = vmatprep.mubr.f32.mxu0 0.0
        %398 = vmatmul.mubr.f32.gmra.mrb[0].mxu0 %v277
        %v399 = vpop.f32.mrb[0].mxu0
        %v400 = vadd.f32 0.0, %v399
        %v401 = vpop.f32.mrb[0].mxu0
        %v402 = vadd.f32 0.0, %v401
        %403 = vmatprep.mubr.f32.mxu0 0.0
        %404 = vmatmul.mubr.f32.gmra.mrb[0].mxu0 %v280
        %v405 = vpop.f32.mrb[0].mxu0
        %v406 = vadd.f32 0.0, %v405
        %v407 = vpop.f32.mrb[0].mxu0
        %v408 = vadd.f32 0.0, %v407
        %409 = vmatprep.mubr.f32.mxu0 0.0
        %410 = vmatmul.mubr.f32.gmra.mrb[0].mxu0 %v283
        %v411 = vpop.f32.mrb[0].mxu0
        %v412 = vadd.f32 0.0, %v411
        %v413 = vpop.f32.mrb[0].mxu0
        %v414 = vadd.f32 0.0, %v413
        %415 = vmatprep.mubr.f32.mxu0 0.0
        %416 = vmatmul.mubr.f32.gmra.mrb[0].mxu0 %v286
        %v417 = vpop.f32.mrb[0].mxu0
        %v418 = vadd.f32 0.0, %v417
        %v419 = vpop.f32.mrb[0].mxu0
        %v420 = vadd.f32 0.0, %v419
        %421 = vmatprep.mubr.f32.mxu0 0.0
        %422 = vmatmul.mubr.f32.gmra.mrb[0].mxu0 %v289
        %v423 = vpop.f32.mrb[0].mxu0
        %v424 = vadd.f32 0.0, %v423
        %v425 = vpop.f32.mrb[0].mxu0
        %v426 = vadd.f32 0.0, %v425
        %427 = vmatprep.mubr.f32.mxu0 0.0
        %428 = vmatmul.mubr.f32.gmra.mrb[0].mxu0 %v292
        %v429 = vpop.f32.mrb[0].mxu0
        %v430 = vadd.f32 0.0, %v429
        %v431 = vpop.f32.mrb[0].mxu0
        %v432 = vadd.f32 0.0, %v431
        %433 = vmatprep.mubr.f32.mxu0 0.0
        %434 = vmatmul.mubr.f32.gmra.mrb[0].mxu0 %v295
        %v435 = vpop.f32.mrb[0].mxu0
        %v436 = vadd.f32 0.0, %v435
        %v437 = vpop.f32.mrb[0].mxu0
        %v438 = vadd.f32 0.0, %v437
        %439 = vmatprep.mubr.f32.mxu0 0.0
        %440 = vmatmul.mubr.f32.gmra.mrb[0].mxu0 %v298
        %v441 = vpop.f32.mrb[0].mxu0
        %v442 = vadd.f32 0.0, %v441
        %v443 = vpop.f32.mrb[0].mxu0
        %v444 = vadd.f32 0.0, %v443
        %445 = vmatprep.mubr.f32.mxu0 0.0
        %446 = vmatmul.mubr.f32.gmra.mrb[0].mxu0 %v301
        %v447 = vpop.f32.mrb[0].mxu0
        %v448 = vadd.f32 0.0, %v447
        %v449 = vpop.f32.mrb[0].mxu0
        %v450 = vadd.f32 0.0, %v449
        %451 = vmatprep.mubr.f32.mxu0 0.0
        %452 = vmatmul.mubr.f32.gmra.mrb[0].mxu0 %v304
        %v453 = vpop.f32.mrb[0].mxu0
        %v454 = vadd.f32 0.0, %v453
        %v455 = vpop.f32.mrb[0].mxu0
        %v456 = vadd.f32 0.0, %v455
        %457 = vmatprep.mubr.f32.mxu0 0.0
        %458 = vmatmul.mubr.f32.gmra.mrb[0].mxu0 %v307
        %v459 = vpop.f32.mrb[0].mxu0
        %v460 = vadd.f32 0.0, %v459
        %v461 = vpop.f32.mrb[0].mxu0
        %v462 = vadd.f32 0.0, %v461
        %463 = vmatprep.mubr.f32.mxu0 0.0
        %464 = vmatmul.mubr.f32.gmra.mrb[0].mxu0 %v310
        %v465 = vpop.f32.mrb[0].mxu0
        %v466 = vadd.f32 0.0, %v465
        %v467 = vpop.f32.mrb[0].mxu0
        %v468 = vadd.f32 0.0, %v467
        %469 = vmatprep.mubr.f32.mxu0 0.0
        %470 = vmatmul.mubr.f32.gmra.mrb[0].mxu0 %v313
        %v471 = vpop.f32.mrb[0].mxu0
        %v472 = vadd.f32 0.0, %v471
        %v473 = vpop.f32.mrb[0].mxu0
        %v474 = vadd.f32 0.0, %v473
        %475 = vmatprep.mubr.f32.mxu0 0.0
        %476 = vmatmul.mubr.f32.gmra.mrb[0].mxu0 %v316
        %v477 = vpop.f32.mrb[0].mxu0
        %v478 = vadd.f32 0.0, %v477
        %v479 = vpop.f32.mrb[0].mxu0
        %v480 = vadd.f32 0.0, %v479
        %481 = vmatprep.mubr.f32.mxu0 0.0
        %482 = vmatmul.mubr.f32.gmra.mrb[0].mxu0 %v319
        %v483 = vpop.f32.mrb[0].mxu0
        %v484 = vadd.f32 0.0, %v483
        %v485 = vpop.f32.mrb[0].mxu0
        %v486 = vadd.f32 0.0, %v485
        %487 = vmatprep.mubr.f32.mxu0 0.0
        %488 = vmatmul.mubr.f32.gmra.mrb[0].mxu0 %v322
        %v489 = vpop.f32.mrb[0].mxu0
        %v490 = vadd.f32 0.0, %v489
        %v491 = vpop.f32.mrb[0].mxu0
        %v492 = vadd.f32 0.0, %v491
        %493 = vmatprep.mubr.f32.mxu0 0.0
        %494 = vmatmul.mubr.f32.gmra.mrb[0].mxu0 %v325
        %v495 = vpop.f32.mrb[0].mxu0
        %v496 = vadd.f32 0.0, %v495
        %v497 = vpop.f32.mrb[0].mxu0
        %v498 = vadd.f32 0.0, %v497
        %499 = vdwg.mxu0
        %500 = vst [vmem:[%s214] sm:$0xff] %v394
        %501 = vst [vmem:[%s214 + $0x8] sm:$0xff] %v396
        %502 = vst [vmem:[%s214 + $0x10] sm:$0xff] %v400
        %503 = vst [vmem:[%s214 + $0x18] sm:$0xff] %v402
        %504 = vst [vmem:[%s214 + $0x20] sm:$0xff] %v406
        %505 = vst [vmem:[%s214 + $0x28] sm:$0xff] %v408
        %506 = vst [vmem:[%s214 + $0x30] sm:$0xff] %v412
        %507 = vst [vmem:[%s214 + $0x38] sm:$0xff] %v414
        %508 = vst [vmem:[%s214 + $0x40] sm:$0xff] %v418
        %509 = vst [vmem:[%s214 + $0x48] sm:$0xff] %v420
        %510 = vst [vmem:[%s214 + $0x50] sm:$0xff] %v424
        %511 = vst [vmem:[%s214 + $0x58] sm:$0xff] %v426
        %512 = vst [vmem:[%s214 + $0x60] sm:$0xff] %v430
        %513 = vst [vmem:[%s214 + $0x68] sm:$0xff] %v432
        %514 = vst [vmem:[%s214 + $0x70] sm:$0xff] %v436
        %515 = vst [vmem:[%s214 + $0x78] sm:$0xff] %v438
        %516 = vst [vmem:[%s214 + $0x80] sm:$0xff] %v442
        %517 = vst [vmem:[%s214 + $0x88] sm:$0xff] %v444
        %518 = vst [vmem:[%s214 + $0x90] sm:$0xff] %v448
        %519 = vst [vmem:[%s214 + $0x98] sm:$0xff] %v450
        %520 = vst [vmem:[%s214 + $0xa0] sm:$0xff] %v454
        %521 = vst [vmem:[%s214 + $0xa8] sm:$0xff] %v456
        %522 = vst [vmem:[%s214 + $0xb0] sm:$0xff] %v460
        %523 = vst [vmem:[%s214 + $0xb8] sm:$0xff] %v462
        %524 = vst [vmem:[%s214 + $0xc0] sm:$0xff] %v466
        %525 = vst [vmem:[%s214 + $0xc8] sm:$0xff] %v468
        %526 = vst [vmem:[%s214 + $0xd0] sm:$0xff] %v472
        %527 = vst [vmem:[%s214 + $0xd8] sm:$0xff] %v474
        %528 = vst [vmem:[%s214 + $0xe0] sm:$0xff] %v478
        %529 = vst [vmem:[%s214 + $0xe8] sm:$0xff] %v480
        %530 = vst [vmem:[%s214 + $0xf0] sm:$0xff] %v484
        %531 = vst [vmem:[%s214 + $0xf8] sm:$0xff] %v486
        %532 = vst [vmem:[%s214 + $0x100] sm:$0xff] %v490
        %533 = vst [vmem:[%s214 + $0x108] sm:$0xff] %v492
        %534 = vst [vmem:[%s214 + $0x110] sm:$0xff] %v496
        %535 = vst [vmem:[%s214 + $0x118] sm:$0xff] %v498
        %s536 = sand.u32 %s116, 1
        %s537 = scalar_lea.sflag [#allocation3], %s536
        %s538 = sand.u32 %s116, 1
        %s539 = smul.addr %s538, 288
        %s540 = scalar_lea.vmem [#allocation2], %s539
        // Predicated region
        $region33: #{tpu_custom_call.1} parent=31 // pred_check
          %p541 = pneg %p126
        $region34: #{tpu_custom_call.1} parent=31 // pred_check_branch
          %543 = sbr.rel (%p541) target = $region36
        $region35: #{tpu_custom_call.1} parent=31 // pred_region
          %s544 = smul.u32 2, %s22
          %s546 = ssub.s32 4608, 4608
          %547 = vsyncadd %s537, %s546
          %s548 = smul.addr %s21, 36
          %s549 = sadd.s32 %s544, %s548
          %s550 = smul.addr %s549, 128
          %s551 = scalar_lea.hbm %s3, %s550
          %s552 = sshll.u32 %s540, 4
          %s553 = int_to_ptr.vmem [resolvable:$true] %s552
          %558 = dma.vmem_to_hbm [thread:$0]  %s553, 4608, %s551, %s537, 256, 256, 16
        $region36: #{tpu_custom_call.1} parent=31 // pred_fallthru
          _
      $region32: #{tpu_custom_call.1} parent=5 // pred_fallthru
        _
      %p559 = scmp.le.s32.totalorder 2, %s12
      // Predicated region
      $region37: #{tpu_custom_call.1} parent=5 // pred_check
        %p560 = pneg %p559
      $region38: #{tpu_custom_call.1} parent=5 // pred_check_branch
        %562 = sbr.rel (%p560) target = $region40
      $region39: #{tpu_custom_call.1} parent=5 // pred_region
        %s563 = ssub.s32 %s12, 2
        // Predicated region
        $region41: #{tpu_custom_call.1} parent=39 // pred_check
          %p564 = pneg %p132
        $region42: #{tpu_custom_call.1} parent=39 // pred_check_branch
          %566 = sbr.rel (%p564) target = $region44
        $region43: #{tpu_custom_call.1} parent=39 // pred_region
          %s567 = sand.u32 %s117, 1
          %s568 = scalar_lea.sflag [#allocation3], %s567
          %s569 = sand.u32 %s117, 1
          %s570 = smul.addr %s569, 288
          %s571 = scalar_lea.vmem [#allocation2], %s570
          %572 = dma.done %s568, 4608
        $region44: #{tpu_custom_call.1} parent=39 // pred_fallthru
          _
      $region40: #{tpu_custom_call.1} parent=5 // pred_fallthru
        _
    $region6: #{tpu_custom_call.1} parent=1 // loop_footer
      %s16 = sadd.s32 1, %s12
    $region7: #{tpu_custom_call.1} parent=1 // loop_footer_branch
      %11 = sbr.rel target = $region3
    $region8: #{tpu_custom_call.1} parent=1 // loop_exit
      _
    %573 = vsyncpa [#allocation3], 1
    %s574 = scalar_lea.sflag [#allocation3], 1
    %575 = vsyncpa %s574, 1

</llo_original>
